<compile_context>
chip_gen: v7x
topology: tpu7x:2x2x1
jax: 0.10.0
libtpu: 0.0.40
codegen_flags: <defaults>
</compile_context>

<pallas_src>
import functools

import jax
import jax.numpy as jnp
from jax import lax
from jax.experimental import pallas as pl
from jax.experimental.pallas import tpu as pltpu


_LANE = 128


def _vmem_limit_bytes():
    """Generation-aware scoped-VMEM budget (conservative fallback: 64 MiB/TC)."""
    cap = None
    try:
        cap = int(getattr(pltpu.get_tpu_info(), "vmem_capacity_bytes", 0)) or None
    except Exception:
        cap = None
    if cap is None:
        cap = 64 * 1024 * 1024
    # ~70% of per-core VMEM, capped at 96 MiB (v5e/v6e) -> ~45 MiB on v7x.
    return max(32 * 1024 * 1024, min(int(cap * 0.7), 96 * 1024 * 1024))


def _pick_tiling(m, k, itemsize, vmem_limit, max_tile_k=None):
    """Return (tile_k, nk_total, num_parallel, nk_per_core)."""
    reserve = 8 * m * m + (2 << 20)            # (m,m) f32 acc output (x2) + margin
    avail = max(vmem_limit - reserve, 4 << 20)
    budget_tk = max(_LANE, (avail // (2 * m * itemsize)) // _LANE * _LANE)
    if max_tile_k is not None:
        budget_tk = min(budget_tk, max(_LANE, (max_tile_k // _LANE) * _LANE))
    if k <= budget_tk and k <= 2 * _LANE:
        return k, 1, 1, 1                      # tiny K: one full-extent tile
    # Keep >= 2 K-tiles so the leading "parallel" axis can feed both v7x TCs.
    half_tk = pl.cdiv(pl.cdiv(k, 2), _LANE) * _LANE
    tile_k = min(budget_tk, half_tk)
    nk_total = pl.cdiv(k, tile_k)
    num_p = 2 if nk_total >= 2 else 1
    nkh = pl.cdiv(nk_total, num_p)
    return tile_k, nk_total, num_p, nkh


# --------------------------------------------------------------------------- #
# Kernel: per-core partial gram  G_p = sum_{k-tiles of core p} F_tile @ F_tile^T
# --------------------------------------------------------------------------- #
def _partial_gram_kernel(f_ref, g_ref, *, k_total, tile_k, nkh, needs_mask,
                         compute_dtype):
    kk = pl.program_id(1)

    @pl.when(kk == 0)
    def _init():
        g_ref[...] = jnp.zeros_like(g_ref)

    f = f_ref[...]
    if needs_mask:
        # Zero the lanes past the true K extent (ragged last tile and any
        # fully-out-of-range tile when nk_total is odd).  Zero columns do not
        # change F @ F^T.  Pure VPU work, hidden under the tile DMA.
        gk = pl.program_id(0) * nkh + kk
        valid = k_total - gk * tile_k
        lane = lax.broadcasted_iota(jnp.int32, f.shape, 1)
        f = jnp.where(lane < valid, f, jnp.zeros_like(f))
    if compute_dtype is not None:
        # v5e option: bf16 MXU path with f32 accumulation, no extra HBM bytes.
        f = f.astype(compute_dtype)
    # Contract the shared K axis directly (no materialized F.T copy).
    g_ref[...] += lax.dot_general(
        f, f,
        dimension_numbers=(((1,), (1,)), ((), ())),
        preferred_element_type=jnp.float32,
    )


@functools.lru_cache(maxsize=None)
def _build_partial_gram_call(m, k, dtype_name, compute_dtype_name, max_tile_k):
    in_dtype = jnp.dtype(dtype_name)
    compute_dtype = None if compute_dtype_name is None else jnp.dtype(compute_dtype_name)
    vmem_limit = _vmem_limit_bytes()
    tile_k, nk_total, num_p, nkh = _pick_tiling(
        m, k, in_dtype.itemsize, vmem_limit, max_tile_k)
    needs_mask = (num_p * nkh * tile_k != k)
    last_block = nk_total - 1

    def f_index_map(p, kk):
        # Clamp so out-of-range tiles (odd nk_total) never DMA past F; their data
        # is fully zeroed by the in-kernel mask anyway.
        return (0, jnp.minimum(p * nkh + kk, last_block))

    kernel = functools.partial(
        _partial_gram_kernel, k_total=k, tile_k=tile_k, nkh=nkh,
        needs_mask=needs_mask, compute_dtype=compute_dtype)

    return pl.pallas_call(
        kernel,
        out_shape=jax.ShapeDtypeStruct((num_p, m, m), jnp.float32),
        grid_spec=pltpu.PrefetchScalarGridSpec(
            num_scalar_prefetch=0,
            grid=(num_p, nkh),
            in_specs=[pl.BlockSpec((m, tile_k), f_index_map)],
            out_specs=pl.BlockSpec((None, m, m), lambda p, kk: (p, 0, 0)),
        ),
        compiler_params=pltpu.CompilerParams(
            dimension_semantics=("parallel", "arbitrary"),
            vmem_limit_bytes=vmem_limit,
        ),
        cost_estimate=pl.CostEstimate(
            flops=int(2 * m * m * num_p * nkh * tile_k),
            transcendentals=0,
            bytes_accessed=int(m * num_p * nkh * tile_k * in_dtype.itemsize
                               + num_p * m * m * 4),
        ),
    )


@functools.lru_cache(maxsize=None)
def _build_gram_fn(m, k, dtype_name, compute_dtype_name, max_tile_k):
    call = _build_partial_gram_call(m, k, dtype_name, compute_dtype_name, max_tile_k)
    scale = 1.0 / float(m * k)

    @jax.jit
    def gram_fn(x):
        f = x.reshape(m, k)                       # keep input dtype (no upcast pass)
        partials = call(f)                        # (num_p, m, m) f32
        return jnp.sum(partials, axis=0) * scale  # tiny XLA epilogue
    return gram_fn


def gram_pallas(x, *, compute_dtype=None, max_tile_k=None):
    """gram(x) for x of shape (n, c, h, w) -> (n*c, n*c) float32 (Pallas MXU)."""
    n, c, h, w = x.shape
    fn = _build_gram_fn(
        n * c, h * w, jnp.dtype(x.dtype).name,
        None if compute_dtype is None else jnp.dtype(compute_dtype).name,
        max_tile_k)
    return fn(x)


# --------------------------------------------------------------------------- #
# Differentiable functional style loss (forward via Pallas, backward analytic).
# --------------------------------------------------------------------------- #
@jax.custom_vjp
def style_loss_pallas(x, target_gram):
    g = gram_pallas(x)
    d = g - target_gram.astype(g.dtype)
    return jnp.mean(d * d)


def _style_loss_fwd(x, target_gram):
    g = gram_pallas(x)
    d = g - target_gram.astype(g.dtype)
    return jnp.mean(d * d), (x, d)


def _style_loss_bwd(res, ct):
    x, d = res
    n, c, h, w = x.shape
    m, k = n * c, h * w
    f = x.reshape(m, k).astype(jnp.float32)
    # L = mean((s*F F^T - T)^2), s = 1/(n*c*h*w)  =>  dL/dF = 4*s/M^2 * (G - T) @ F
    # TODO(synk): stream this (M,M)@(M,K) backward matmul over K with a Pallas
    # kernel for very large h*w; XLA handles it fine at typical VGG shapes.
    df = (4.0 / (float(m * k) * float(m * m))) * jnp.dot(d, f)
    dx = (ct * df).reshape(x.shape).astype(x.dtype)
    dt = (ct * (-2.0 / float(m * m)) * d).astype(res[1].dtype)
    return dx, dt


style_loss_pallas.defvjp(_style_loss_fwd, _style_loss_bwd)


# --------------------------------------------------------------------------- #
# Module mirroring torch StyleLoss (forward returns input, stashes .loss).
# --------------------------------------------------------------------------- #
class StyleLossPallas:
    def __init__(self, target, *, compute_dtype=None, max_tile_k=None):
        self._compute_dtype = compute_dtype
        self._max_tile_k = max_tile_k
        self.target_gram = gram_pallas(
            lax.stop_gradient(target),
            compute_dtype=compute_dtype, max_tile_k=max_tile_k)
        self.loss = None

    def __call__(self, x):
        # NOTE: stashing self.loss mimics the torch module; for grad-driven style
        # transfer use the functional, differentiable `style_loss_pallas(x, T)`.
        if self._compute_dtype is None and self._max_tile_k is None:
            self.loss = style_loss_pallas(x, self.target_gram)
        else:
            g = gram_pallas(x, compute_dtype=self._compute_dtype,
                            max_tile_k=self._max_tile_k)
            d = g - self.target_gram
            self.loss = jnp.mean(d * d)
        return x


# --------------------------------------------------------------------------- #
# Reference + self-test
# --------------------------------------------------------------------------- #
def _gram_ref(x):
    n, c, h, w = x.shape
    f = x.reshape(n * c, h * w).astype(jnp.float32)
    g = jnp.dot(f, f.T, precision=lax.Precision.HIGHEST)
    return g / (n * c * h * w)


if __name__ == "__main__":
    key = jax.random.PRNGKey(0)
    k1, k2, k3, k4, k5, k6 = jax.random.split(key, 6)

    # Case 1: f32, single K tile; forward parity + gradient through custom_vjp.
    x = jax.random.normal(k1, (2, 4, 16, 16), jnp.float32)
    t = jax.random.normal(k2, (2, 4, 16, 16), jnp.float32)
    mod = StyleLossPallas(t)
    out = jax.block_until_ready(mod(x))
    loss = jax.block_until_ready(mod.loss)
    assert out.shape == x.shape and jnp.allclose(out, x), "forward must return input"
    assert jnp.allclose(mod.target_gram, _gram_ref(t), rtol=1e-5, atol=1e-6)
    loss_ref = jnp.mean((_gram_ref(x) - mod.target_gram) ** 2)
    assert jnp.allclose(loss, loss_ref, rtol=1e-5, atol=1e-7), (loss, loss_ref)

    g_pallas = jax.block_until_ready(jax.grad(style_loss_pallas)(x, mod.target_gram))
    g_ref = jax.grad(lambda xx: jnp.mean((_gram_ref(xx) - mod.target_gram) ** 2))(x)
    assert jnp.allclose(g_pallas, g_ref, rtol=2e-4, atol=1e-8), "bad gradient"

    # Case 2: f32, forced K tiling (2 cores x 1 tile, ragged last tile masked).
    x2 = jax.random.normal(k3, (1, 8, 12, 16), jnp.float32)   # K = 192
    t2 = jax.random.normal(k4, (1, 8, 12, 16), jnp.float32)
    mod2 = StyleLossPallas(t2, max_tile_k=128)
    out2 = jax.block_until_ready(mod2(x2))
    loss2 = jax.block_until_ready(mod2.loss)
    loss2_ref = jnp.mean((_gram_ref(x2) - mod2.target_gram) ** 2)
    assert jnp.allclose(out2, x2)
    assert jnp.allclose(mod2.target_gram, _gram_ref(t2), rtol=1e-5, atol=1e-6)
    assert jnp.allclose(loss2, loss2_ref, rtol=1e-5, atol=1e-7), (loss2, loss2_ref)

    # Case 3: bf16 features, odd tile count (exercises clamp + fully-masked tile).
    x3 = jax.random.normal(k5, (1, 8, 20, 16), jnp.float32).astype(jnp.bfloat16)  # K=320
    t3 = jax.random.normal(k6, (1, 8, 20, 16), jnp.float32).astype(jnp.bfloat16)
    mod3 = StyleLossPallas(t3, max_tile_k=128)
    out3 = jax.block_until_ready(mod3(x3))
    loss3 = jax.block_until_ready(mod3.loss)
    loss3_ref = jnp.mean((_gram_ref(x3) - mod3.target_gram) ** 2)
    assert jnp.allclose(out3, x3)
    assert jnp.allclose(mod3.target_gram, _gram_ref(t3), rtol=1e-4, atol=1e-5)
    assert jnp.allclose(loss3, loss3_ref, rtol=1e-4, atol=1e-6), (loss3, loss3_ref)

    print("KERNEL_OK")
</pallas_src>

<mosaic_0001>
module attributes {stable_mosaic.version = 11 : i64} {
  func.func @_partial_gram_kernel(%arg0: i32, %arg1: i32, %arg2: memref<8x256xf32, #tpu.memory_space<vmem>>, %arg3: memref<1x8x8xf32, #tpu.memory_space<vmem>>) attributes {dimension_semantics = [#tpu.dimension_semantics<parallel>, #tpu.dimension_semantics<arbitrary>], iteration_bounds = array<i64: 1, 1>, scalar_prefetch = 0 : i64, scratch_operands = 0 : i64, tpu.core_type = #tpu.core_type<tc>, window_params = [{transform_indices = @transform_0, window_bounds = array<i64: 8, 256>}, {transform_indices = @transform_1, window_bounds = array<i64: 1, 8, 8>}]} {
    %c0_i32 = arith.constant 0 : i32
    %0 = arith.cmpi eq, %arg1, %c0_i32 : i32
    %1 = arith.extui %0 : i1 to i32
    %c0_i32_0 = arith.constant 0 : i32
    %2 = arith.cmpi ne, %1, %c0_i32_0 : i32
    scf.if %2 {
      %cst_8 = arith.constant 0.000000e+00 : f32
      %11 = vector.broadcast %cst_8 : f32 to vector<8x8xf32>
      %c0_9 = arith.constant 0 : index
      %c0_10 = arith.constant 0 : index
      %c0_11 = arith.constant 0 : index
      %12 = vector.load %arg3[%c0_9, %c0_10, %c0_11] : memref<1x8x8xf32, #tpu.memory_space<vmem>>, vector<1x8x8xf32>
      %13 = vector.shape_cast %12 : vector<1x8x8xf32> to vector<8x8xf32>
      %14 = vector.shape_cast %11 : vector<8x8xf32> to vector<1x8x8xf32>
      tpu.vector_store %arg3[%c0_9, %c0_10, %c0_11], %14 {strides = array<i32>} : memref<1x8x8xf32, #tpu.memory_space<vmem>>, vector<1x8x8xf32>,
    } else {
    }
    %c0 = arith.constant 0 : index
    %c0_1 = arith.constant 0 : index
    %3 = vector.load %arg2[%c0, %c0_1] : memref<8x256xf32, #tpu.memory_space<vmem>>, vector<8x256xf32>
    %c0_2 = arith.constant 0 : index
    %c0_3 = arith.constant 0 : index
    %c0_4 = arith.constant 0 : index
    %4 = vector.load %arg3[%c0_2, %c0_3, %c0_4] : memref<1x8x8xf32, #tpu.memory_space<vmem>>, vector<1x8x8xf32>
    %5 = vector.shape_cast %4 : vector<1x8x8xf32> to vector<8x8xf32>
    %cst = arith.constant dense<0.000000e+00> : vector<8x8xf32>
    %6 = tpu.matmul %3, %3, %cst {dimension_numbers = #tpu.dot_dimension_numbers<[1], [1], [0], [0], [0, 0, 1, 0], [], []>} : vector<8x256xf32>, vector<8x256xf32>, vector<8x8xf32> -> vector<8x8xf32>
    %7 = arith.addf %5, %6 : vector<8x8xf32>
    %c0_5 = arith.constant 0 : index
    %c0_6 = arith.constant 0 : index
    %c0_7 = arith.constant 0 : index
    %8 = vector.load %arg3[%c0_5, %c0_6, %c0_7] : memref<1x8x8xf32, #tpu.memory_space<vmem>>, vector<1x8x8xf32>
    %9 = vector.shape_cast %8 : vector<1x8x8xf32> to vector<8x8xf32>
    %10 = vector.shape_cast %7 : vector<8x8xf32> to vector<1x8x8xf32>
    tpu.vector_store %arg3[%c0_5, %c0_6, %c0_7], %10 {strides = array<i32>} : memref<1x8x8xf32, #tpu.memory_space<vmem>>, vector<1x8x8xf32>,
    return
  }
  func.func @transform_0(%arg0: i32, %arg1: i32) -> (i32, i32) {
    %c1_i32 = arith.constant 1 : i32
    %0 = arith.muli %arg0, %c1_i32 : i32
    %1 = arith.addi %0, %arg1 : i32
    %c0_i32 = arith.constant 0 : i32
    %2 = arith.minsi %1, %c0_i32 : i32
    %c0_i32_0 = arith.constant 0 : i32
    %c0_i32_1 = arith.constant 0 : i32
    return %c0_i32_0, %2 : i32, i32
  }
  func.func @transform_1(%arg0: i32, %arg1: i32) -> (i32, i32, i32) {
    %c0_i32 = arith.constant 0 : i32
    %c0_i32_0 = arith.constant 0 : i32
    %c0_i32_1 = arith.constant 0 : i32
    return %arg0, %c0_i32, %c0_i32_0 : i32, i32, i32
  }
}

</mosaic_0001>

<llo_original>
// kernel: gram_fn.1
$region0: #{gram_fn.1}
  #allocation0 [shape = 'u32[]', space=smem, size = 0x4, offset = 0x4, fixed_abs, tag = 'smem constant byte address 0x4 - core index']
  #allocation1 [shape = 'u32[144,128]{1,0:T(1,128)}', space=vmem, size = 0x12000, scoped, tag = 'internal scratch']
  %s0 = inlined_call_operand.vmem [shape: f32[8,256], index: 0, kind: input, shape index: {}]
  %s1 = inlined_call_operand.vmem [shape: f32[1,8,8], index: 1, kind: output, shape index: {}]
  %s2 = sld [smem:[#allocation0]]
  $region18: #{gram_fn.1} parent=0
    _
  %s4 = ssub.s32 1, %s2
  %s5 = scalar_select 0, %s4, %s2
  // Predicated region
  $region2: #{gram_fn.1} parent=0 // pred_check
    _
  $region3: #{gram_fn.1} parent=0 // pred_check_branch
    %7 = sbr.rel (0) target = $region5
  $region4: #{gram_fn.1} parent=0 // pred_region
    %s8 = sadd.s32 0, 0
    %p9 = scmp.lt.s32.totalorder %s8, 0
    %s10 = scalar_select %p9, %s8, 0
    %s11 = smul.u32 2, %s10
    %p12 = scmp.lt.s32.totalorder %s11, 1
    %s13 = scalar_select %p12, %s11, 1
    %s14 = smul.addr %s13, 8
    %s15 = scalar_lea.vmem %s0, %s14
    %s16 = sadd.s32 0, 0
    %p17 = scmp.lt.s32.totalorder %s16, 0
    %s18 = scalar_select %p17, %s16, 0
    %s19 = smul.u32 2, %s18
  $region5: #{gram_fn.1} parent=0 // pred_fallthru
    _
  %s20 = sadd.s32 0, 0
  %p21 = scmp.lt.s32.totalorder %s20, 0
  %s22 = scalar_select %p21, %s20, 0
  %s23 = smul.u32 2, %s22
  %p24 = scmp.lt.s32.totalorder %s23, 1
  %s25 = scalar_select %p24, %s23, 1
  %s26 = smul.addr %s25, 8
  %s27 = scalar_lea.vmem %s0, %s26
  %s28 = sadd.s32 0, 0
  %p29 = scmp.lt.s32.totalorder %s28, 0
  %s30 = scalar_select %p29, %s28, 0
  %s31 = smul.u32 2, %s30
  %p32 = scmp.lt.s32.totalorder %s31, 1
  %s33 = scalar_select %p32, %s31, 1
  %s34 = smul.addr %s33, 8
  %s35 = scalar_lea.vmem %s0, %s34
  %s36 = sadd.s32 0, 0
  %p37 = scmp.lt.s32.totalorder %s36, 0
  %s38 = scalar_select %p37, %s36, 0
  %s39 = smul.u32 2, %s38
  %p40 = scmp.eq.s32.totalorder 0, 0
  // Predicated region
  $region6: #{gram_fn.1} parent=0 // pred_check
    %p41 = pneg %p40
  $region7: #{gram_fn.1} parent=0 // pred_check_branch
    %43 = sbr.rel (%p41) target = $region9
  $region8: #{gram_fn.1} parent=0 // pred_region
    %vm44 = vcmask 64512
    %45 = vst.msk [vmem:[%s1] sm:$0xff] %vm44, 0.0
  $region9: #{gram_fn.1} parent=0 // pred_fallthru
    _
  %v46 = vld [vmem:[%s35] sm:$0xff]
  %v47 = vld [vmem:[%s35 + $0x8] sm:$0xff]
  %v48 = vld [vmem:[%s1] sm:$0xff]
  %49 = vmatprep.subr.mxu0 %v47
  %50 = vmatpush1.xpose.msra.mxu0 %v46
  %51 = vmatprep.subr.mxu0 0.0
  %52 = vmatpush1.xpose.msra.mxu0 0.0
  %53 = vmatprep.subr.mxu0 0.0
  %54 = vmatpush1.xpose.msra.mxu0 0.0
  %55 = vmatprep.subr.mxu0 0.0
  %56 = vmatpush1.xpose.msra.mxu0 0.0
  %57 = vmatprep.subr.mxu0 0.0
  %58 = vmatpush1.xpose.msra.mxu0 0.0
  %59 = vmatprep.subr.mxu0 0.0
  %60 = vmatpush1.xpose.msra.mxu0 0.0
  %61 = vmatprep.subr.mxu0 0.0
  %62 = vmatpush1.xpose.msra.mxu0 0.0
  %63 = vmatprep.subr.mxu0 0.0
  %64 = vmatpush1.xpose.msra.mxu0 0.0
  %65 = vmatprep.subr.mxu0 0.0
  %66 = vmatpush1.xpose.msra.mxu0 0.0
  %67 = vmatprep.subr.mxu0 0.0
  %68 = vmatpush1.xpose.msra.mxu0 0.0
  %69 = vmatprep.subr.mxu0 0.0
  %70 = vmatpush1.xpose.msra.mxu0 0.0
  %71 = vmatprep.subr.mxu0 0.0
  %72 = vmatpush1.xpose.msra.mxu0 0.0
  %73 = vmatprep.subr.mxu0 0.0
  %74 = vmatpush1.xpose.msra.mxu0 0.0
  %75 = vmatprep.subr.mxu0 0.0
  %76 = vmatpush1.xpose.msra.mxu0 0.0
  %77 = vmatprep.subr.mxu0 0.0
  %78 = vmatpush1.xpose.msra.mxu0 0.0
  %79 = vmatprep.subr.mxu0 0.0
  %80 = vmatpush1.xpose.msra.mxu0 0.0
  %81 = vmatprep.subr.mxu0 0.0
  %82 = vmatpush1.xpose.msra.mxu0 0.0
  %83 = vmatprep.subr.mxu0 0.0
  %84 = vmatpush1.xpose.msra.mxu0 0.0
  %85 = vmatprep.subr.mxu0 0.0
  %86 = vmatpush1.xpose.msra.mxu0 0.0
  %87 = vmatprep.subr.mxu0 0.0
  %88 = vmatpush1.xpose.msra.mxu0 0.0
  %89 = vmatprep.subr.mxu0 0.0
  %90 = vmatpush1.xpose.msra.mxu0 0.0
  %91 = vmatprep.subr.mxu0 0.0
  %92 = vmatpush1.xpose.msra.mxu0 0.0
  %93 = vmatprep.subr.mxu0 0.0
  %94 = vmatpush1.xpose.msra.mxu0 0.0
  %95 = vmatprep.subr.mxu0 0.0
  %96 = vmatpush1.xpose.msra.mxu0 0.0
  %97 = vmatprep.subr.mxu0 0.0
  %98 = vmatpush1.xpose.msra.mxu0 0.0
  %99 = vmatprep.subr.mxu0 0.0
  %100 = vmatpush1.xpose.msra.mxu0 0.0
  %101 = vmatprep.subr.mxu0 0.0
  %102 = vmatpush1.xpose.msra.mxu0 0.0
  %103 = vmatprep.subr.mxu0 0.0
  %104 = vmatpush1.xpose.msra.mxu0 0.0
  %105 = vmatprep.subr.mxu0 0.0
  %106 = vmatpush1.xpose.msra.mxu0 0.0
  %107 = vmatprep.subr.mxu0 0.0
  %108 = vmatpush1.xpose.msra.mxu0 0.0
  %109 = vmatprep.subr.mxu0 0.0
  %110 = vmatpush1.xpose.msra.mxu0 0.0
  %111 = vmatprep.subr.mxu0 0.0
  %112 = vmatpush1.xpose.msra.mxu0 0.0
  %113 = vmatprep.mubr.f32.mxu0 %v47
  %114 = vmatmul.mubr.f32.gmra.mrb[0].mxu0 %v46
  %v115 = vpop.f32.mrb[0].mxu0
  %v116 = vadd.f32 0.0, %v115
  %v117 = vpop.f32.mrb[0].mxu0
  %118 = vdwg.mxu0
  %v119 = vadd.f32 %v48, %v116
  %vm120 = vcmask 64512
  %121 = vst.msk [vmem:[%s1] sm:$0xff] %vm120, %v119
  // Predicated region
  $region10: #{gram_fn.1} parent=0 // pred_check
    _
  $region11: #{gram_fn.1} parent=0 // pred_check_branch
    %123 = sbr.rel (0) target = $region13
  $region12: #{gram_fn.1} parent=0 // pred_region
    _
  $region13: #{gram_fn.1} parent=0 // pred_fallthru
    _
  // Predicated region
  $region14: #{gram_fn.1} parent=0 // pred_check
    _
  $region15: #{gram_fn.1} parent=0 // pred_check_branch
    %125 = sbr.rel (0) target = $region17
  $region16: #{gram_fn.1} parent=0 // pred_region
    _
  $region17: #{gram_fn.1} parent=0 // pred_fallthru
    _

</llo_original>
